<compile_context>
chip_gen: v6e
topology: v6e:2x2x1
jax: 0.10.0
libtpu: 0.0.40
codegen_flags: <defaults>
</compile_context>

<pallas_src>
import numpy as np
import jax
import jax.numpy as jnp
from jax import lax
from jax.experimental import pallas as pl
from jax.experimental.pallas import tpu as pltpu


def _round_up(x, m):
    return -(-x // m) * m


# ----------------------------------------------------------------------------
# Kernel 1: row-tiled GEMM + bias + ReLU (both im2col convolutions)
#   x: [M, K] bf16, w: [K, 128] bf16 (block-diagonal), b: [1, 128] f32
#   out: relu(x @ w + b) stored bf16, lane-dense (last dim = 128).
# ----------------------------------------------------------------------------
def _gemm_bias_relu_kernel(x_ref, w_ref, b_ref, o_ref):
    acc = jnp.dot(x_ref[...], w_ref[...], preferred_element_type=jnp.float32)
    o_ref[...] = jnp.maximum(acc + b_ref[...], 0.0).astype(o_ref.dtype)


def gemm_bias_relu(x, w, b, *, tile_m=512):
    m, k = x.shape
    l = w.shape[1]
    tm = min(tile_m, _round_up(m, 16))       # small-batch friendly tile
    mp = _round_up(m, tm)
    if mp != m:
        x = jnp.pad(x, ((0, mp - m), (0, 0)))
    out = pl.pallas_call(
        _gemm_bias_relu_kernel,
        out_shape=jax.ShapeDtypeStruct((mp, l), jnp.bfloat16),
        grid=(mp // tm,),
        in_specs=[
            pl.BlockSpec((tm, k), lambda i: (i, 0)),   # row tile of patches
            pl.BlockSpec((k, l), lambda i: (0, 0)),    # weight (constant)
            pl.BlockSpec((1, l), lambda i: (0, 0)),    # bias   (constant)
        ],
        out_specs=pl.BlockSpec((tm, l), lambda i: (i, 0)),
        compiler_params=pltpu.CompilerParams(
            dimension_semantics=("parallel",)),
    )(x, w, b)
    return out[:m] if mp != m else out


# ----------------------------------------------------------------------------
# Kernel 2: fused fc1(ReLU) + fc2
#   Grid: (batch tiles ["parallel"], hidden strips ["arbitrary", reduction]).
#   Each step: h = relu(x @ W1_strip + b1_strip); acc += h @ W2_strip.
#   Logits (+ b2) are written on the last strip.  W1 is pre-tiled in HBM as
#   [L1/tile_n, K, tile_n] so each strip DMA is a contiguous burst.
# ----------------------------------------------------------------------------
def _fc_fused_kernel(x_ref, w1_ref, b1_ref, w2_ref, b2_ref, o_ref, acc_ref):
    j = pl.program_id(1)

    @pl.when(j == 0)
    def _():
        acc_ref[...] = jnp.zeros_like(acc_ref)

    h = jnp.dot(x_ref[...], w1_ref[0], preferred_element_type=jnp.float32)
    h = jnp.maximum(h + b1_ref[...], 0.0)                         # [tb, tn] f32
    acc_ref[...] += jnp.dot(h.astype(jnp.bfloat16), w2_ref[...],
                            preferred_element_type=jnp.float32)   # [tb, 128]

    @pl.when(j == pl.num_programs(1) - 1)
    def _():
        o_ref[...] = acc_ref[...] + b2_ref[...]


def fc1_fc2_fused(x, w1_tiled, b1, w2, b2, *, tile_b=256):
    npad, k = x.shape
    n_strips, _, tn = w1_tiled.shape
    l2 = w2.shape[1]
    tb = min(tile_b, npad)
    assert npad % tb == 0
    return pl.pallas_call(
        _fc_fused_kernel,
        out_shape=jax.ShapeDtypeStruct((npad, l2), jnp.float32),
        grid_spec=pltpu.PrefetchScalarGridSpec(
            num_scalar_prefetch=0,
            grid=(npad // tb, n_strips),
            in_specs=[
                pl.BlockSpec((tb, k), lambda i, j: (i, 0)),       # activations
                pl.BlockSpec((1, k, tn), lambda i, j: (j, 0, 0)),  # fc1 W strip
                pl.BlockSpec((1, tn), lambda i, j: (0, j)),       # fc1 bias strip
                pl.BlockSpec((tn, l2), lambda i, j: (j, 0)),      # fc2 W rows
                pl.BlockSpec((1, l2), lambda i, j: (0, 0)),       # fc2 bias
            ],
            out_specs=pl.BlockSpec((tb, l2), lambda i, j: (i, 0)),
            scratch_shapes=[pltpu.VMEM((tb, l2), jnp.float32)],
        ),
        compiler_params=pltpu.CompilerParams(
            dimension_semantics=("parallel", "arbitrary")),
    )(x, w1_tiled, b1, w2, b2)


# ----------------------------------------------------------------------------
# JAX glue: im2col (5x5, stride 1), 2x2 max-pool
# ----------------------------------------------------------------------------
def _im2col(x_nhwc, k, pad):
    n, h, w, c = x_nhwc.shape
    xp = jnp.pad(x_nhwc, ((0, 0), (pad, pad), (pad, pad), (0, 0)))
    cols = []
    for i in range(k):
        for j in range(k):
            cols.append(xp[:, i:i + h, j:j + w, :])
    patches = jnp.stack(cols, axis=3)              # [n, h, w, k*k, c]
    return patches.reshape(n * h * w, k * k * c)   # rows ordered (n, y, x)


def _maxpool2x2(x_nhwc):
    n, h, w, c = x_nhwc.shape
    return x_nhwc.reshape(n, h // 2, 2, w // 2, 2, c).max(axis=(2, 4))


# ----------------------------------------------------------------------------
# LeNet module (Pallas forward + pure-JAX reference)
# ----------------------------------------------------------------------------
class LeNetPallas:
    MEAN = 0.1307
    STD = 0.3081
    LOUT_PAD = 128   # lane-dense fc2 output (10 real logits, rest zero)
    TILE_N = 512     # fc1 hidden strip width
    CONV1_PIX = 4    # pixels per GEMM row for conv1 (4 * 32ch = 128 lanes)
    CONV2_PIX = 2    # pixels per GEMM row for conv2 (2 * 64ch = 128 lanes)

    def __init__(self, key, normalize=True):
        self.normalize = normalize
        k1, k2, k3, k4, k5, k6, k7, k8 = jax.random.split(key, 8)

        def init(k, shape, fan_in):
            return jax.random.normal(k, shape, jnp.float32) / np.sqrt(fan_in)

        # Weights in im2col / matrix layout (rows ordered (kh, kw, cin)).
        self.w1 = init(k1, (5 * 5 * 1, 32), 25)        # conv1: 1 -> 32
        self.b1 = init(k2, (1, 32), 25)
        self.w2 = init(k3, (5 * 5 * 32, 64), 800)      # conv2: 32 -> 64
        self.b2 = init(k4, (1, 64), 800)
        self.wf1 = init(k5, (7 * 7 * 64, 1024), 3136)  # fc1
        self.bf1 = init(k6, (1, 1024), 3136)
        self.wf2 = init(k7, (1024, 10), 1024)          # fc2
        self.bf2 = init(k8, (1, 10), 1024)

        # conv1: pad patch-K 25 -> 32, block-diagonal for 4 pixels per row.
        w1p = jnp.zeros((32, 32), jnp.float32).at[:25, :].set(self.w1)
        self.wbd1 = jnp.kron(jnp.eye(self.CONV1_PIX, dtype=jnp.float32),
                             w1p).astype(jnp.bfloat16)            # [128, 128]
        self.b1w = jnp.tile(self.b1, (1, self.CONV1_PIX))         # [1, 128]

        # conv2: block-diagonal for 2 pixels per row.
        self.wbd2 = jnp.kron(jnp.eye(self.CONV2_PIX, dtype=jnp.float32),
                             self.w2).astype(jnp.bfloat16)        # [1600, 128]
        self.b2w = jnp.tile(self.b2, (1, self.CONV2_PIX))         # [1, 128]

        # fc1 weight pre-tiled so each 512-wide strip is a contiguous DMA;
        # fc2 padded to a 128-wide lane-dense logit slab.
        ns = 1024 // self.TILE_N
        self.wf1_tiled = jnp.moveaxis(
            self.wf1.reshape(3136, ns, self.TILE_N), 1, 0
        ).astype(jnp.bfloat16)                                    # [ns, 3136, 512]
        pad_l = self.LOUT_PAD - 10
        self.wf2_pad = jnp.pad(self.wf2, ((0, 0), (0, pad_l))).astype(jnp.bfloat16)
        self.bf2_pad = jnp.pad(self.bf2, ((0, 0), (0, pad_l)))

    # ---- Pallas forward ----------------------------------------------------
    def __call__(self, x_nchw):
        n = x_nchw.shape[0]
        x = x_nchw
        if self.normalize:
            x = (x - self.MEAN) / self.STD
        x = jnp.transpose(x, (0, 2, 3, 1)).astype(jnp.bfloat16)   # NHWC

        # conv1 + ReLU: im2col (K padded 25->32), 4 pixels packed per GEMM row.
        p1 = _im2col(x, 5, 2)                                     # [N*784, 25]
        p1 = jnp.pad(p1, ((0, 0), (0, 7)))                        # K -> 32
        p1 = p1.reshape(n * 196, self.CONV1_PIX * 32)             # [N*196, 128]
        c1 = gemm_bias_relu(p1, self.wbd1, self.b1w)              # bf16 lane-dense
        m1 = _maxpool2x2(c1.reshape(n, 28, 28, 32))               # [N,14,14,32] bf16

        # conv2 + ReLU: im2col, 2 pixels packed per GEMM row.
        # TODO(synk): fuse im2col + max-pool into the kernel (shift-and-matmul
        # over the 5x5 offsets) to avoid the 25x p2 expansion at large batch.
        p2 = _im2col(m1, 5, 2)                                    # [N*196, 800]
        p2 = p2.reshape(n * 98, self.CONV2_PIX * 800)             # [N*98, 1600]
        c2 = gemm_bias_relu(p2, self.wbd2, self.b2w)              # bf16 lane-dense
        m2 = _maxpool2x2(c2.reshape(n, 14, 14, 64))               # [N,7,7,64] bf16

        # flatten in torch's NCHW view order, pad rows for bf16 packing,
        # fused fc1 + fc2.
        flat = jnp.transpose(m2, (0, 3, 1, 2)).reshape(n, 7 * 7 * 64)
        npad = _round_up(max(n, 16), 16)
        flat = jnp.pad(flat.astype(jnp.bfloat16), ((0, npad - n), (0, 0)))
        logits = fc1_fc2_fused(flat, self.wf1_tiled, self.bf1,
                               self.wf2_pad, self.bf2_pad)
        return logits[:n, :10]

    # ---- pure-JAX reference (same bf16 rounding points, no Pallas) ---------
    def reference(self, x_nchw):
        n = x_nchw.shape[0]
        x = x_nchw
        if self.normalize:
            x = (x - self.MEAN) / self.STD
        x = jnp.transpose(x, (0, 2, 3, 1)).astype(jnp.bfloat16)
        dn = ('NHWC', 'HWIO', 'NHWC')
        w1 = self.w1.astype(jnp.bfloat16).reshape(5, 5, 1, 32)
        w2 = self.w2.astype(jnp.bfloat16).reshape(5, 5, 32, 64)
        c1 = lax.conv_general_dilated(
            x, w1, (1, 1), [(2, 2), (2, 2)], dimension_numbers=dn,
            preferred_element_type=jnp.float32)
        c1 = jnp.maximum(c1 + self.b1.reshape(1, 1, 1, 32), 0.0)
        m1 = _maxpool2x2(c1).astype(jnp.bfloat16)
        c2 = lax.conv_general_dilated(
            m1, w2, (1, 1), [(2, 2), (2, 2)], dimension_numbers=dn,
            preferred_element_type=jnp.float32)
        c2 = jnp.maximum(c2 + self.b2.reshape(1, 1, 1, 64), 0.0)
        m2 = _maxpool2x2(c2)
        flat = jnp.transpose(m2, (0, 3, 1, 2)).reshape(n, -1).astype(jnp.bfloat16)
        h = jnp.maximum(
            jnp.dot(flat, self.wf1.astype(jnp.bfloat16),
                    preferred_element_type=jnp.float32) + self.bf1, 0.0)
        return (jnp.dot(h.astype(jnp.bfloat16), self.wf2.astype(jnp.bfloat16),
                        preferred_element_type=jnp.float32) + self.bf2)


# ----------------------------------------------------------------------------
# Main
# ----------------------------------------------------------------------------
if __name__ == "__main__":
    key = jax.random.PRNGKey(0)
    kx, kp = jax.random.split(key)

    N = 2
    x = jax.random.normal(kx, (N, 1, 28, 28), jnp.float32)   # NCHW, MNIST-sized

    model = LeNetPallas(kp, normalize=True)

    out = model(x)                       # [N, 10] logits
    jax.block_until_ready(out)

    ref = model.reference(x)
    assert out.shape == (N, 10)
    # Same bf16 rounding points in both paths; only summation order differs.
    assert jnp.allclose(out, ref, rtol=1e-2, atol=1e-2), (out, ref)

    print("KERNEL_OK")
</pallas_src>

<mosaic_0001>
module attributes {stable_mosaic.version = 11 : i64} {
  func.func @_gemm_bias_relu_kernel(%arg0: i32, %arg1: memref<400x128xbf16, #tpu.memory_space<vmem>>, %arg2: memref<128x128xbf16, #tpu.memory_space<vmem>>, %arg3: memref<1x128xf32, #tpu.memory_space<vmem>>, %arg4: memref<400x128xbf16, #tpu.memory_space<vmem>>) attributes {dimension_semantics = [#tpu.dimension_semantics<parallel>], iteration_bounds = array<i64: 1>, scalar_prefetch = 0 : i64, scratch_operands = 0 : i64, tpu.core_type = #tpu.core_type<tc>, window_params = [{transform_indices = @transform_0, window_bounds = array<i64: 400, 128>}, {pipeline_mode = #tpu.pipeline_mode<synchronous>, transform_indices = @transform_1, window_bounds = array<i64: 128, 128>}, {pipeline_mode = #tpu.pipeline_mode<synchronous>, transform_indices = @transform_2, window_bounds = array<i64: 1, 128>}, {transform_indices = @transform_3, window_bounds = array<i64: 400, 128>}]} {
    %c0 = arith.constant 0 : index
    %c0_0 = arith.constant 0 : index
    %0 = vector.load %arg1[%c0, %c0_0] : memref<400x128xbf16, #tpu.memory_space<vmem>>, vector<400x128xbf16>
    %c0_1 = arith.constant 0 : index
    %c0_2 = arith.constant 0 : index
    %1 = vector.load %arg2[%c0_1, %c0_2] : memref<128x128xbf16, #tpu.memory_space<vmem>>, vector<128x128xbf16>
    %cst = arith.constant dense<0.000000e+00> : vector<400x128xf32>
    %2 = tpu.matmul %0, %1, %cst {dimension_numbers = #tpu.dot_dimension_numbers<[1], [0], [0], [1], [0, 0, 1, 1], [], []>} : vector<400x128xbf16>, vector<128x128xbf16>, vector<400x128xf32> -> vector<400x128xf32>
    %c0_3 = arith.constant 0 : index
    %c0_4 = arith.constant 0 : index
    %3 = vector.load %arg3[%c0_3, %c0_4] : memref<1x128xf32, #tpu.memory_space<vmem>>, vector<1x128xf32>
    %4 = vector.broadcast %3 : vector<1x128xf32> to vector<400x128xf32>
    %5 = arith.addf %2, %4 : vector<400x128xf32>
    %cst_5 = arith.constant 0.000000e+00 : f32
    %6 = vector.broadcast %cst_5 : f32 to vector<400x128xf32>
    %7 = arith.maximumf %5, %6 : vector<400x128xf32>
    %8 = arith.truncf %7 : vector<400x128xf32> to vector<400x128xbf16>
    %c0_6 = arith.constant 0 : index
    %c0_7 = arith.constant 0 : index
    %9 = vector.load %arg4[%c0_6, %c0_7] : memref<400x128xbf16, #tpu.memory_space<vmem>>, vector<400x128xbf16>
    tpu.vector_store %arg4[%c0_6, %c0_7], %8 {strides = array<i32>} : memref<400x128xbf16, #tpu.memory_space<vmem>>, vector<400x128xbf16>,
    return
  }
  func.func @transform_0(%arg0: i32) -> (i32, i32) {
    %c0_i32 = arith.constant 0 : i32
    %c0_i32_0 = arith.constant 0 : i32
    return %arg0, %c0_i32 : i32, i32
  }
  func.func @transform_1(%arg0: i32) -> (i32, i32) {
    %c0_i32 = arith.constant 0 : i32
    %c0_i32_0 = arith.constant 0 : i32
    %c0_i32_1 = arith.constant 0 : i32
    return %c0_i32, %c0_i32_0 : i32, i32
  }
  func.func @transform_2(%arg0: i32) -> (i32, i32) {
    %c0_i32 = arith.constant 0 : i32
    %c0_i32_0 = arith.constant 0 : i32
    %c0_i32_1 = arith.constant 0 : i32
    return %c0_i32, %c0_i32_0 : i32, i32
  }
  func.func @transform_3(%arg0: i32) -> (i32, i32) {
    %c0_i32 = arith.constant 0 : i32
    %c0_i32_0 = arith.constant 0 : i32
    return %arg0, %c0_i32 : i32, i32
  }
}

</mosaic_0001>

<llo_original>
// kernel: tpu_custom_call.1
$region0: #{tpu_custom_call.1}
  #allocation0 [shape = 'u32[]', space=smem, size = 0x4, offset = 0x4, fixed_abs, tag = 'smem constant byte address 0x4 - core index']
  #allocation1 [shape = 'u32[144,128]{1,0:T(1,128)}', space=vmem, size = 0x12000, scoped, tag = 'internal scratch']
  %s0 = inlined_call_operand.hbm [shape: bf16[400,128], index: 0, kind: input, shape index: {}]
  %s1 = inlined_call_operand.hbm [shape: bf16[128,128], index: 1, kind: input, shape index: {}]
  %s2 = inlined_call_operand.vmem [shape: f32[1,128], index: 2, kind: input, shape index: {}]
  %s3 = inlined_call_operand.hbm [shape: bf16[400,128], index: 3, kind: output, shape index: {}]
  %s4 = sld [smem:[#allocation0]]
  $region30: #{tpu_custom_call.1} parent=0
    _
  %s6 = ssub.s32 1, %s4
  %s7 = scalar_select 0, %s6, %s4
  $region1: #{tpu_custom_call.1} parent=0
    #allocation2 [shape = 'u8[102400]{0}', space=vmem, size = 0x19000, scoped, tag = 'input window, operand 0, single buffered']
    #allocation3 [shape = 's32[1]{0}', space=sflag, size = 0x4, scoped, tag = 'scoped memory for tpu_custom_call.1']
    #allocation4 [shape = 's32[1]{0}', space=sflag, size = 0x4, scoped, tag = 'scoped memory for tpu_custom_call.1']
    #allocation5 [shape = 'u8[32768]{0}', space=vmem, size = 0x8000, scoped, tag = 'input window, operand 1, single buffered']
    #allocation6 [shape = 's32[1]{0}', space=sflag, size = 0x4, scoped, tag = 'scoped memory for tpu_custom_call.1']
    #allocation7 [shape = 'u8[102400]{0}', space=vmem, size = 0x19000, scoped, tag = 'output window, operand 0, single buffered']
    %8 = vsyncpa [#allocation3], 0
    %9 = vsyncpa [#allocation6], 0
    %10 = vsyncpa [#allocation4], 0
    // Predicated region
    $region2: #{tpu_custom_call.1} parent=1 // pred_check
      _
    $region3: #{tpu_custom_call.1} parent=1 // pred_check_branch
      %12 = sbr.rel (0) target = $region5
    $region4: #{tpu_custom_call.1} parent=1 // pred_region
      %s14 = ssub.s32 3200, 3200
      %15 = vsyncadd [#allocation3], %s14
      %s16 = sshll.u32 [#allocation2], 4
      %s17 = int_to_ptr.vmem [resolvable:$true] %s16
      %22 = dma.hbm_to_vmem [thread:$0]  %s0, 3200, %s17, [#allocation3], 64, 64, 4
    $region5: #{tpu_custom_call.1} parent=1 // pred_fallthru
      _
    // Predicated region
    $region6: #{tpu_custom_call.1} parent=1 // pred_check
      _
    $region7: #{tpu_custom_call.1} parent=1 // pred_check_branch
      %24 = sbr.rel (0) target = $region9
    $region8: #{tpu_custom_call.1} parent=1 // pred_region
      %s26 = ssub.s32 1024, 1024
      %27 = vsyncadd [#allocation6], %s26
      %s28 = sshll.u32 [#allocation5], 4
      %s29 = int_to_ptr.vmem [resolvable:$true] %s28
      %34 = dma.hbm_to_vmem [thread:$0]  %s1, 1024, %s29, [#allocation6], 64, 64, 4
    $region9: #{tpu_custom_call.1} parent=1 // pred_fallthru
      _
    // Predicated region
    $region10: #{tpu_custom_call.1} parent=1 // pred_check
      _
    $region11: #{tpu_custom_call.1} parent=1 // pred_check_branch
      %36 = sbr.rel (0) target = $region13
    $region12: #{tpu_custom_call.1} parent=1 // pred_region
      _
    $region13: #{tpu_custom_call.1} parent=1 // pred_fallthru
      _
    // Predicated region
    $region14: #{tpu_custom_call.1} parent=1 // pred_check
      _
    $region15: #{tpu_custom_call.1} parent=1 // pred_check_branch
      %38 = sbr.rel (0) target = $region17
    $region16: #{tpu_custom_call.1} parent=1 // pred_region
      %39 = dma.done [#allocation3], 3200
    $region17: #{tpu_custom_call.1} parent=1 // pred_fallthru
      _
    // Predicated region
    $region18: #{tpu_custom_call.1} parent=1 // pred_check
      _
    $region19: #{tpu_custom_call.1} parent=1 // pred_check_branch
      %41 = sbr.rel (0) target = $region21
    $region20: #{tpu_custom_call.1} parent=1 // pred_region
      %42 = dma.done [#allocation6], 1024
    $region21: #{tpu_custom_call.1} parent=1 // pred_fallthru
      _
    %v44 = vld [vmem:[#allocation2] sm:$0xf]
    %v45 = vld [vmem:[#allocation2 + $0x4] sm:$0xf]
    %v46 = vld [vmem:[#allocation2 + $0x8] sm:$0xf]
    %v47 = vld [vmem:[#allocation2 + $0xc] sm:$0xf]
    %v48 = vld [vmem:[#allocation2 + $0x10] sm:$0xf]
    %v49 = vld [vmem:[#allocation2 + $0x14] sm:$0xf]
    %v50 = vld [vmem:[#allocation2 + $0x18] sm:$0xf]
    %v51 = vld [vmem:[#allocation2 + $0x1c] sm:$0xf]
    %v52 = vld [vmem:[#allocation2 + $0x20] sm:$0xf]
    %v53 = vld [vmem:[#allocation2 + $0x24] sm:$0xf]
    %v54 = vld [vmem:[#allocation2 + $0x28] sm:$0xf]
    %v55 = vld [vmem:[#allocation2 + $0x2c] sm:$0xf]
    %v56 = vld [vmem:[#allocation2 + $0x30] sm:$0xf]
    %v57 = vld [vmem:[#allocation2 + $0x34] sm:$0xf]
    %v58 = vld [vmem:[#allocation2 + $0x38] sm:$0xf]
    %v59 = vld [vmem:[#allocation2 + $0x3c] sm:$0xf]
    %v60 = vld [vmem:[#allocation2 + $0x40] sm:$0xf]
    %v61 = vld [vmem:[#allocation2 + $0x44] sm:$0xf]
    %v62 = vld [vmem:[#allocation2 + $0x48] sm:$0xf]
    %v63 = vld [vmem:[#allocation2 + $0x4c] sm:$0xf]
    %v64 = vld [vmem:[#allocation2 + $0x50] sm:$0xf]
    %v65 = vld [vmem:[#allocation2 + $0x54] sm:$0xf]
    %v66 = vld [vmem:[#allocation2 + $0x58] sm:$0xf]
    %v67 = vld [vmem:[#allocation2 + $0x5c] sm:$0xf]
    %v68 = vld [vmem:[#allocation2 + $0x60] sm:$0xf]
    %v69 = vld [vmem:[#allocation2 + $0x64] sm:$0xf]
    %v70 = vld [vmem:[#allocation2 + $0x68] sm:$0xf]
    %v71 = vld [vmem:[#allocation2 + $0x6c] sm:$0xf]
    %v72 = vld [vmem:[#allocation2 + $0x70] sm:$0xf]
    %v73 = vld [vmem:[#allocation2 + $0x74] sm:$0xf]
    %v74 = vld [vmem:[#allocation2 + $0x78] sm:$0xf]
    %v75 = vld [vmem:[#allocation2 + $0x7c] sm:$0xf]
    %v76 = vld [vmem:[#allocation2 + $0x80] sm:$0xf]
    %v77 = vld [vmem:[#allocation2 + $0x84] sm:$0xf]
    %v78 = vld [vmem:[#allocation2 + $0x88] sm:$0xf]
    %v79 = vld [vmem:[#allocation2 + $0x8c] sm:$0xf]
    %v80 = vld [vmem:[#allocation2 + $0x90] sm:$0xf]
    %v81 = vld [vmem:[#allocation2 + $0x94] sm:$0xf]
    %v82 = vld [vmem:[#allocation2 + $0x98] sm:$0xf]
    %v83 = vld [vmem:[#allocation2 + $0x9c] sm:$0xf]
    %v84 = vld [vmem:[#allocation2 + $0xa0] sm:$0xf]
    %v85 = vld [vmem:[#allocation2 + $0xa4] sm:$0xf]
    %v86 = vld [vmem:[#allocation2 + $0xa8] sm:$0xf]
    %v87 = vld [vmem:[#allocation2 + $0xac] sm:$0xf]
    %v88 = vld [vmem:[#allocation2 + $0xb0] sm:$0xf]
    %v89 = vld [vmem:[#allocation2 + $0xb4] sm:$0xf]
    %v90 = vld [vmem:[#allocation2 + $0xb8] sm:$0xf]
    %v91 = vld [vmem:[#allocation2 + $0xbc] sm:$0xf]
    %v92 = vld [vmem:[#allocation2 + $0xc0] sm:$0xf]
    %v93 = vld [vmem:[#allocation2 + $0xc4] sm:$0xf]
    %v94 = vld [vmem:[#allocation5] sm:$0xf]
    %v95 = vld [vmem:[#allocation5 + $0x4] sm:$0xf]
    %v96 = vld [vmem:[#allocation5 + $0x8] sm:$0xf]
    %v97 = vld [vmem:[#allocation5 + $0xc] sm:$0xf]
    %v98 = vld [vmem:[#allocation5 + $0x10] sm:$0xf]
    %v99 = vld [vmem:[#allocation5 + $0x14] sm:$0xf]
    %v100 = vld [vmem:[#allocation5 + $0x18] sm:$0xf]
    %v101 = vld [vmem:[#allocation5 + $0x1c] sm:$0xf]
    %v102 = vld [vmem:[#allocation5 + $0x20] sm:$0xf]
    %v103 = vld [vmem:[#allocation5 + $0x24] sm:$0xf]
    %v104 = vld [vmem:[#allocation5 + $0x28] sm:$0xf]
    %v105 = vld [vmem:[#allocation5 + $0x2c] sm:$0xf]
    %v106 = vld [vmem:[#allocation5 + $0x30] sm:$0xf]
    %v107 = vld [vmem:[#allocation5 + $0x34] sm:$0xf]
    %v108 = vld [vmem:[#allocation5 + $0x38] sm:$0xf]
    %v109 = vld [vmem:[#allocation5 + $0x3c] sm:$0xf]
    %v110 = vld [vmem:[%s2] sm:$0x1]
    %v112 = vlaneseq
    %v113 = vshrl.u32 %v112, 7
    %v114 = vsub.s32 0, %v113
    %v115 = vrot.slane %v110, %v114
    %v167 = vunpack.c.l.b16 %v44
    %v168 = vunpack.c.l.b16 %v45
    %v169 = vunpack.c.l.b16 %v46
    %v170 = vunpack.c.l.b16 %v47
    %v171 = vunpack.c.l.b16 %v48
    %v172 = vunpack.c.l.b16 %v49
    %v173 = vunpack.c.l.b16 %v50
    %v174 = vunpack.c.l.b16 %v51
    %v175 = vunpack.c.l.b16 %v52
    %v176 = vunpack.c.l.b16 %v53
    %v177 = vunpack.c.l.b16 %v54
    %v178 = vunpack.c.l.b16 %v55
    %v179 = vunpack.c.l.b16 %v56
    %v180 = vunpack.c.l.b16 %v57
    %v181 = vunpack.c.l.b16 %v58
    %v182 = vunpack.c.l.b16 %v59
    %v183 = vunpack.c.l.b16 %v60
    %v184 = vunpack.c.l.b16 %v61
    %v185 = vunpack.c.l.b16 %v62
    %v186 = vunpack.c.l.b16 %v63
    %v187 = vunpack.c.l.b16 %v64
    %v188 = vunpack.c.l.b16 %v65
    %v189 = vunpack.c.l.b16 %v66
    %v190 = vunpack.c.l.b16 %v67
    %v191 = vunpack.c.l.b16 %v68
    %v192 = vunpack.c.l.b16 %v69
    %v193 = vunpack.c.l.b16 %v70
    %v194 = vunpack.c.l.b16 %v71
    %v195 = vunpack.c.l.b16 %v72
    %v196 = vunpack.c.l.b16 %v73
    %v197 = vunpack.c.l.b16 %v74
    %v198 = vunpack.c.l.b16 %v75
    %v199 = vunpack.c.l.b16 %v76
    %v200 = vunpack.c.l.b16 %v77
    %v201 = vunpack.c.l.b16 %v78
    %v202 = vunpack.c.l.b16 %v79
    %v203 = vunpack.c.l.b16 %v80
    %v204 = vunpack.c.l.b16 %v81
    %v205 = vunpack.c.l.b16 %v82
    %v206 = vunpack.c.l.b16 %v83
    %v207 = vunpack.c.l.b16 %v84
    %v208 = vunpack.c.l.b16 %v85
    %v209 = vunpack.c.l.b16 %v86
    %v210 = vunpack.c.l.b16 %v87
    %v211 = vunpack.c.l.b16 %v88
    %v212 = vunpack.c.l.b16 %v89
    %v213 = vunpack.c.l.b16 %v90
    %v214 = vunpack.c.l.b16 %v91
    %v215 = vunpack.c.l.b16 %v92
    %v216 = vunpack.c.l.b16 %v93
    %v217 = vpack.c.b16 %v168, %v167
    %v218 = vpack.c.b16 %v170, %v169
    %v219 = vpack.c.b16 %v172, %v171
    %v220 = vpack.c.b16 %v174, %v173
    %v221 = vpack.c.b16 %v176, %v175
    %v222 = vpack.c.b16 %v178, %v177
    %v223 = vpack.c.b16 %v180, %v179
    %v224 = vpack.c.b16 %v182, %v181
    %v225 = vpack.c.b16 %v184, %v183
    %v226 = vpack.c.b16 %v186, %v185
    %v227 = vpack.c.b16 %v188, %v187
    %v228 = vpack.c.b16 %v190, %v189
    %v229 = vpack.c.b16 %v192, %v191
    %v230 = vpack.c.b16 %v194, %v193
    %v231 = vpack.c.b16 %v196, %v195
    %v232 = vpack.c.b16 %v198, %v197
    %v233 = vpack.c.b16 %v200, %v199
    %v234 = vpack.c.b16 %v202, %v201
    %v235 = vpack.c.b16 %v204, %v203
    %v236 = vpack.c.b16 %v206, %v205
    %v237 = vpack.c.b16 %v208, %v207
    %v238 = vpack.c.b16 %v210, %v209
    %v239 = vpack.c.b16 %v212, %v211
    %v240 = vpack.c.b16 %v214, %v213
    %v241 = vpack.c.b16 %v216, %v215
    %v283 = vunpack.c.l.b16 %v94
    %v284 = vunpack.c.l.b16 %v95
    %v285 = vunpack.c.l.b16 %v96
    %v286 = vunpack.c.l.b16 %v97
    %v287 = vunpack.c.l.b16 %v98
    %v288 = vunpack.c.l.b16 %v99
    %v289 = vunpack.c.l.b16 %v100
    %v290 = vunpack.c.l.b16 %v101
    %v291 = vunpack.c.l.b16 %v102
    %v292 = vunpack.c.l.b16 %v103
    %v293 = vunpack.c.l.b16 %v104
    %v294 = vunpack.c.l.b16 %v105
    %v295 = vunpack.c.l.b16 %v106
    %v296 = vunpack.c.l.b16 %v107
    %v297 = vunpack.c.l.b16 %v108
    %v298 = vunpack.c.l.b16 %v109
    %v299 = vpack.c.b16 %v284, %v283
    %v300 = vpack.c.b16 %v286, %v285
    %v301 = vpack.c.b16 %v288, %v287
    %v302 = vpack.c.b16 %v290, %v289
    %v303 = vpack.c.b16 %v292, %v291
    %v304 = vpack.c.b16 %v294, %v293
    %v305 = vpack.c.b16 %v296, %v295
    %v306 = vpack.c.b16 %v298, %v297
    %315 = vmatprep.subr.bf16.mxu0 0
    %316 = vmatpush1.bf16.msra.mxu0 %v306
    %317 = vmatprep.subr.bf16.mxu0 0
    %318 = vmatpush1.bf16.msra.mxu0 %v305
    %319 = vmatprep.subr.bf16.mxu0 0
    %320 = vmatpush1.bf16.msra.mxu0 %v304
    %321 = vmatprep.subr.bf16.mxu0 0
    %322 = vmatpush1.bf16.msra.mxu0 %v303
    %323 = vmatprep.subr.bf16.mxu0 0
    %324 = vmatpush1.bf16.msra.mxu0 %v302
    %325 = vmatprep.subr.bf16.mxu0 0
    %326 = vmatpush1.bf16.msra.mxu0 %v301
    %327 = vmatprep.subr.bf16.mxu0 0
    %328 = vmatpush1.bf16.msra.mxu0 %v300
    %329 = vmatprep.subr.bf16.mxu0 0
    %330 = vmatpush1.bf16.msra.mxu0 %v299
    %331 = vmatprep.subr.bf16.mxu0 0
    %332 = vmatpush2.bf16.msra.mxu0 0
    %333 = vmatprep.subr.bf16.mxu0 0
    %334 = vmatpush2.bf16.msra.mxu0 0
    %335 = vmatprep.subr.bf16.mxu0 0
    %336 = vmatpush2.bf16.msra.mxu0 0
    %337 = vmatprep.subr.bf16.mxu0 0
    %338 = vmatpush2.bf16.msra.mxu0 0
    %339 = vmatprep.subr.bf16.mxu0 0
    %340 = vmatpush2.bf16.msra.mxu0 0
    %341 = vmatprep.subr.bf16.mxu0 0
    %342 = vmatpush2.bf16.msra.mxu0 0
    %343 = vmatprep.subr.bf16.mxu0 0
    %344 = vmatpush2.bf16.msra.mxu0 0
    %345 = vmatprep.subr.bf16.mxu0 0
    %346 = vmatpush2.bf16.msra.mxu0 0
    %347 = vmatprep.mubr.bf16.mxu0 0
    %348 = vmatmul.mubr.bf16.gmra.mxu0 %v217
    %v349 = vpop.f32.mrf.mxu0
    %v350 = vadd.f32 %v115, %v349
    %v351 = vpop.f32.mrf.mxu0
    %v352 = vpop.f32.mrf.mxu0
    %v353 = vadd.f32 %v115, %v352
    %v354 = vpop.f32.mrf.mxu0
    %355 = vmatprep.mubr.bf16.mxu0 0
    %356 = vmatmul.mubr.bf16.gmra.mxu0 %v218
    %v357 = vpop.f32.mrf.mxu0
    %v358 = vadd.f32 %v115, %v357
    %v359 = vpop.f32.mrf.mxu0
    %v360 = vpop.f32.mrf.mxu0
    %v361 = vadd.f32 %v115, %v360
    %v362 = vpop.f32.mrf.mxu0
    %363 = vmatprep.mubr.bf16.mxu0 0
    %364 = vmatmul.mubr.bf16.gmra.mxu0 %v219
    %v365 = vpop.f32.mrf.mxu0
    %v366 = vadd.f32 %v115, %v365
    %v367 = vpop.f32.mrf.mxu0
    %v368 = vpop.f32.mrf.mxu0
    %v369 = vadd.f32 %v115, %v368
    %v370 = vpop.f32.mrf.mxu0
    %371 = vmatprep.mubr.bf16.mxu0 0
    %372 = vmatmul.mubr.bf16.gmra.mxu0 %v220
    %v373 = vpop.f32.mrf.mxu0
    %v374 = vadd.f32 %v115, %v373
    %v375 = vpop.f32.mrf.mxu0
    %v376 = vpop.f32.mrf.mxu0
    %v377 = vadd.f32 %v115, %v376
    %v378 = vpop.f32.mrf.mxu0
    %379 = vmatprep.mubr.bf16.mxu0 0
    %380 = vmatmul.mubr.bf16.gmra.mxu0 %v221
    %v381 = vpop.f32.mrf.mxu0
    %v382 = vadd.f32 %v115, %v381
    %v383 = vpop.f32.mrf.mxu0
    %v384 = vpop.f32.mrf.mxu0
    %v385 = vadd.f32 %v115, %v384
    %v386 = vpop.f32.mrf.mxu0
    %387 = vmatprep.mubr.bf16.mxu0 0
    %388 = vmatmul.mubr.bf16.gmra.mxu0 %v222
    %v389 = vpop.f32.mrf.mxu0
    %v390 = vadd.f32 %v115, %v389
    %v391 = vpop.f32.mrf.mxu0
    %v392 = vpop.f32.mrf.mxu0
    %v393 = vadd.f32 %v115, %v392
    %v394 = vpop.f32.mrf.mxu0
    %395 = vmatprep.mubr.bf16.mxu0 0
    %396 = vmatmul.mubr.bf16.gmra.mxu0 %v223
    %v397 = vpop.f32.mrf.mxu0
    %v398 = vadd.f32 %v115, %v397
    %v399 = vpop.f32.mrf.mxu0
    %v400 = vpop.f32.mrf.mxu0
    %v401 = vadd.f32 %v115, %v400
    %v402 = vpop.f32.mrf.mxu0
    %403 = vmatprep.mubr.bf16.mxu0 0
    %404 = vmatmul.mubr.bf16.gmra.mxu0 %v224
    %v405 = vpop.f32.mrf.mxu0
    %v406 = vadd.f32 %v115, %v405
    %v407 = vpop.f32.mrf.mxu0
    %v408 = vpop.f32.mrf.mxu0
    %v409 = vadd.f32 %v115, %v408
    %v410 = vpop.f32.mrf.mxu0
    %411 = vmatprep.mubr.bf16.mxu0 0
    %412 = vmatmul.mubr.bf16.gmra.mxu0 %v225
    %v413 = vpop.f32.mrf.mxu0
    %v414 = vadd.f32 %v115, %v413
    %v415 = vpop.f32.mrf.mxu0
    %v416 = vpop.f32.mrf.mxu0
    %v417 = vadd.f32 %v115, %v416
    %v418 = vpop.f32.mrf.mxu0
    %419 = vmatprep.mubr.bf16.mxu0 0
    %420 = vmatmul.mubr.bf16.gmra.mxu0 %v226
    %v421 = vpop.f32.mrf.mxu0
    %v422 = vadd.f32 %v115, %v421
    %v423 = vpop.f32.mrf.mxu0
    %v424 = vpop.f32.mrf.mxu0
    %v425 = vadd.f32 %v115, %v424
    %v426 = vpop.f32.mrf.mxu0
    %427 = vmatprep.mubr.bf16.mxu0 0
    %428 = vmatmul.mubr.bf16.gmra.mxu0 %v227
    %v429 = vpop.f32.mrf.mxu0
    %v430 = vadd.f32 %v115, %v429
    %v431 = vpop.f32.mrf.mxu0
    %v432 = vpop.f32.mrf.mxu0
    %v433 = vadd.f32 %v115, %v432
    %v434 = vpop.f32.mrf.mxu0
    %435 = vmatprep.mubr.bf16.mxu0 0
    %436 = vmatmul.mubr.bf16.gmra.mxu0 %v228
    %v437 = vpop.f32.mrf.mxu0
    %v438 = vadd.f32 %v115, %v437
    %v439 = vpop.f32.mrf.mxu0
    %v440 = vpop.f32.mrf.mxu0
    %v441 = vadd.f32 %v115, %v440
    %v442 = vpop.f32.mrf.mxu0
    %443 = vmatprep.mubr.bf16.mxu0 0
    %444 = vmatmul.mubr.bf16.gmra.mxu0 %v229
    %v445 = vpop.f32.mrf.mxu0
    %v446 = vadd.f32 %v115, %v445
    %v447 = vpop.f32.mrf.mxu0
    %v448 = vpop.f32.mrf.mxu0
    %v449 = vadd.f32 %v115, %v448
    %v450 = vpop.f32.mrf.mxu0
    %451 = vmatprep.mubr.bf16.mxu0 0
    %452 = vmatmul.mubr.bf16.gmra.mxu0 %v230
    %v453 = vpop.f32.mrf.mxu0
    %v454 = vadd.f32 %v115, %v453
    %v455 = vpop.f32.mrf.mxu0
    %v456 = vpop.f32.mrf.mxu0
    %v457 = vadd.f32 %v115, %v456
    %v458 = vpop.f32.mrf.mxu0
    %459 = vmatprep.mubr.bf16.mxu0 0
    %460 = vmatmul.mubr.bf16.gmra.mxu0 %v231
    %v461 = vpop.f32.mrf.mxu0
    %v462 = vadd.f32 %v115, %v461
    %v463 = vpop.f32.mrf.mxu0
    %v464 = vpop.f32.mrf.mxu0
    %v465 = vadd.f32 %v115, %v464
    %v466 = vpop.f32.mrf.mxu0
    %467 = vmatprep.mubr.bf16.mxu0 0
    %468 = vmatmul.mubr.bf16.gmra.mxu0 %v232
    %v469 = vpop.f32.mrf.mxu0
    %v470 = vadd.f32 %v115, %v469
    %v471 = vpop.f32.mrf.mxu0
    %v472 = vpop.f32.mrf.mxu0
    %v473 = vadd.f32 %v115, %v472
    %v474 = vpop.f32.mrf.mxu0
    %475 = vmatprep.mubr.bf16.mxu0 0
    %476 = vmatmul.mubr.bf16.gmra.mxu0 %v233
    %v477 = vpop.f32.mrf.mxu0
    %v478 = vadd.f32 %v115, %v477
    %v479 = vpop.f32.mrf.mxu0
    %v480 = vpop.f32.mrf.mxu0
    %v481 = vadd.f32 %v115, %v480
    %v482 = vpop.f32.mrf.mxu0
    %483 = vmatprep.mubr.bf16.mxu0 0
    %484 = vmatmul.mubr.bf16.gmra.mxu0 %v234
    %v485 = vpop.f32.mrf.mxu0
    %v486 = vadd.f32 %v115, %v485
    %v487 = vpop.f32.mrf.mxu0
    %v488 = vpop.f32.mrf.mxu0
    %v489 = vadd.f32 %v115, %v488
    %v490 = vpop.f32.mrf.mxu0
    %491 = vmatprep.mubr.bf16.mxu0 0
    %492 = vmatmul.mubr.bf16.gmra.mxu0 %v235
    %v493 = vpop.f32.mrf.mxu0
    %v494 = vadd.f32 %v115, %v493
    %v495 = vpop.f32.mrf.mxu0
    %v496 = vpop.f32.mrf.mxu0
    %v497 = vadd.f32 %v115, %v496
    %v498 = vpop.f32.mrf.mxu0
    %499 = vmatprep.mubr.bf16.mxu0 0
    %500 = vmatmul.mubr.bf16.gmra.mxu0 %v236
    %v501 = vpop.f32.mrf.mxu0
    %v502 = vadd.f32 %v115, %v501
    %v503 = vpop.f32.mrf.mxu0
    %v504 = vpop.f32.mrf.mxu0
    %v505 = vadd.f32 %v115, %v504
    %v506 = vpop.f32.mrf.mxu0
    %507 = vmatprep.mubr.bf16.mxu0 0
    %508 = vmatmul.mubr.bf16.gmra.mxu0 %v237
    %v509 = vpop.f32.mrf.mxu0
    %v510 = vadd.f32 %v115, %v509
    %v511 = vpop.f32.mrf.mxu0
    %v512 = vpop.f32.mrf.mxu0
    %v513 = vadd.f32 %v115, %v512
    %v514 = vpop.f32.mrf.mxu0
    %515 = vmatprep.mubr.bf16.mxu0 0
    %516 = vmatmul.mubr.bf16.gmra.mxu0 %v238
    %v517 = vpop.f32.mrf.mxu0
    %v518 = vadd.f32 %v115, %v517
    %v519 = vpop.f32.mrf.mxu0
    %v520 = vpop.f32.mrf.mxu0
    %v521 = vadd.f32 %v115, %v520
    %v522 = vpop.f32.mrf.mxu0
    %523 = vmatprep.mubr.bf16.mxu0 0
    %524 = vmatmul.mubr.bf16.gmra.mxu0 %v239
    %v525 = vpop.f32.mrf.mxu0
    %v526 = vadd.f32 %v115, %v525
    %v527 = vpop.f32.mrf.mxu0
    %v528 = vpop.f32.mrf.mxu0
    %v529 = vadd.f32 %v115, %v528
    %v530 = vpop.f32.mrf.mxu0
    %531 = vmatprep.mubr.bf16.mxu0 0
    %532 = vmatmul.mubr.bf16.gmra.mxu0 %v240
    %v533 = vpop.f32.mrf.mxu0
    %v534 = vadd.f32 %v115, %v533
    %v535 = vpop.f32.mrf.mxu0
    %v536 = vpop.f32.mrf.mxu0
    %v537 = vadd.f32 %v115, %v536
    %v538 = vpop.f32.mrf.mxu0
    %539 = vmatprep.mubr.bf16.mxu0 0
    %540 = vmatmul.mubr.bf16.gmra.mxu0 %v241
    %v541 = vpop.f32.mrf.mxu0
    %v542 = vadd.f32 %v115, %v541
    %v543 = vpop.f32.mrf.mxu0
    %v544 = vpop.f32.mrf.mxu0
    %v545 = vadd.f32 %v115, %v544
    %v546 = vpop.f32.mrf.mxu0
    %547 = vdwg.mxu0
    %v548 = vmax.f32 %v350, 0.0
    %v549 = vmax.f32 %v353, 0.0
    %v550 = vmax.f32 %v358, 0.0
    %v551 = vmax.f32 %v361, 0.0
    %v552 = vmax.f32 %v366, 0.0
    %v553 = vmax.f32 %v369, 0.0
    %v554 = vmax.f32 %v374, 0.0
    %v555 = vmax.f32 %v377, 0.0
    %v556 = vmax.f32 %v382, 0.0
    %v557 = vmax.f32 %v385, 0.0
    %v558 = vmax.f32 %v390, 0.0
    %v559 = vmax.f32 %v393, 0.0
    %v560 = vmax.f32 %v398, 0.0
    %v561 = vmax.f32 %v401, 0.0
    %v562 = vmax.f32 %v406, 0.0
    %v563 = vmax.f32 %v409, 0.0
    %v564 = vmax.f32 %v414, 0.0
    %v565 = vmax.f32 %v417, 0.0
    %v566 = vmax.f32 %v422, 0.0
    %v567 = vmax.f32 %v425, 0.0
    %v568 = vmax.f32 %v430, 0.0
    %v569 = vmax.f32 %v433, 0.0
    %v570 = vmax.f32 %v438, 0.0
    %v571 = vmax.f32 %v441, 0.0
    %v572 = vmax.f32 %v446, 0.0
    %v573 = vmax.f32 %v449, 0.0
    %v574 = vmax.f32 %v454, 0.0
    %v575 = vmax.f32 %v457, 0.0
    %v576 = vmax.f32 %v462, 0.0
    %v577 = vmax.f32 %v465, 0.0
    %v578 = vmax.f32 %v470, 0.0
    %v579 = vmax.f32 %v473, 0.0
    %v580 = vmax.f32 %v478, 0.0
    %v581 = vmax.f32 %v481, 0.0
    %v582 = vmax.f32 %v486, 0.0
    %v583 = vmax.f32 %v489, 0.0
    %v584 = vmax.f32 %v494, 0.0
    %v585 = vmax.f32 %v497, 0.0
    %v586 = vmax.f32 %v502, 0.0
    %v587 = vmax.f32 %v505, 0.0
    %v588 = vmax.f32 %v510, 0.0
    %v589 = vmax.f32 %v513, 0.0
    %v590 = vmax.f32 %v518, 0.0
    %v591 = vmax.f32 %v521, 0.0
    %v592 = vmax.f32 %v526, 0.0
    %v593 = vmax.f32 %v529, 0.0
    %v594 = vmax.f32 %v534, 0.0
    %v595 = vmax.f32 %v537, 0.0
    %v596 = vmax.f32 %v542, 0.0
    %v597 = vmax.f32 %v545, 0.0
    %v598 = vpack.c.bf16 %v549, %v548
    %v599 = vpack.c.bf16 %v551, %v550
    %v600 = vpack.c.bf16 %v553, %v552
    %v601 = vpack.c.bf16 %v555, %v554
    %v602 = vpack.c.bf16 %v557, %v556
    %v603 = vpack.c.bf16 %v559, %v558
    %v604 = vpack.c.bf16 %v561, %v560
    %v605 = vpack.c.bf16 %v563, %v562
    %v606 = vpack.c.bf16 %v565, %v564
    %v607 = vpack.c.bf16 %v567, %v566
    %v608 = vpack.c.bf16 %v569, %v568
    %v609 = vpack.c.bf16 %v571, %v570
    %v610 = vpack.c.bf16 %v573, %v572
    %v611 = vpack.c.bf16 %v575, %v574
    %v612 = vpack.c.bf16 %v577, %v576
    %v613 = vpack.c.bf16 %v579, %v578
    %v614 = vpack.c.bf16 %v581, %v580
    %v615 = vpack.c.bf16 %v583, %v582
    %v616 = vpack.c.bf16 %v585, %v584
    %v617 = vpack.c.bf16 %v587, %v586
    %v618 = vpack.c.bf16 %v589, %v588
    %v619 = vpack.c.bf16 %v591, %v590
    %v620 = vpack.c.bf16 %v593, %v592
    %v621 = vpack.c.bf16 %v595, %v594
    %v622 = vpack.c.bf16 %v597, %v596
    %v648 = vunpack.c.l.b16 %v598
    %v649 = vunpack.c.h.b16 %v598
    %v650 = vunpack.c.l.b16 %v599
    %v651 = vunpack.c.h.b16 %v599
    %v652 = vunpack.c.l.b16 %v600
    %v653 = vunpack.c.h.b16 %v600
    %v654 = vunpack.c.l.b16 %v601
    %v655 = vunpack.c.h.b16 %v601
    %v656 = vunpack.c.l.b16 %v602
    %v657 = vunpack.c.h.b16 %v602
    %v658 = vunpack.c.l.b16 %v603
    %v659 = vunpack.c.h.b16 %v603
    %v660 = vunpack.c.l.b16 %v604
    %v661 = vunpack.c.h.b16 %v604
    %v662 = vunpack.c.l.b16 %v605
    %v663 = vunpack.c.h.b16 %v605
    %v664 = vunpack.c.l.b16 %v606
    %v665 = vunpack.c.h.b16 %v606
    %v666 = vunpack.c.l.b16 %v607
    %v667 = vunpack.c.h.b16 %v607
    %v668 = vunpack.c.l.b16 %v608
    %v669 = vunpack.c.h.b16 %v608
    %v670 = vunpack.c.l.b16 %v609
    %v671 = vunpack.c.h.b16 %v609
    %v672 = vunpack.c.l.b16 %v610
    %v673 = vunpack.c.h.b16 %v610
    %v674 = vunpack.c.l.b16 %v611
    %v675 = vunpack.c.h.b16 %v611
    %v676 = vunpack.c.l.b16 %v612
    %v677 = vunpack.c.h.b16 %v612
    %v678 = vunpack.c.l.b16 %v613
    %v679 = vunpack.c.h.b16 %v613
    %v680 = vunpack.c.l.b16 %v614
    %v681 = vunpack.c.h.b16 %v614
    %v682 = vunpack.c.l.b16 %v615
    %v683 = vunpack.c.h.b16 %v615
    %v684 = vunpack.c.l.b16 %v616
    %v685 = vunpack.c.h.b16 %v616
    %v686 = vunpack.c.l.b16 %v617
    %v687 = vunpack.c.h.b16 %v617
    %v688 = vunpack.c.l.b16 %v618
    %v689 = vunpack.c.h.b16 %v618
    %v690 = vunpack.c.l.b16 %v619
    %v691 = vunpack.c.h.b16 %v619
    %v692 = vunpack.c.l.b16 %v620
    %v693 = vunpack.c.h.b16 %v620
    %v694 = vunpack.c.l.b16 %v621
    %v695 = vunpack.c.h.b16 %v621
    %v696 = vunpack.c.l.b16 %v622
    %v697 = vunpack.c.h.b16 %v622
    %v698 = vpack.c.b16 %v648, %v648
    %v699 = vpack.c.b16 %v649, %v649
    %v700 = vpack.c.b16 %v650, %v650
    %v701 = vpack.c.b16 %v651, %v651
    %v702 = vpack.c.b16 %v652, %v652
    %v703 = vpack.c.b16 %v653, %v653
    %v704 = vpack.c.b16 %v654, %v654
    %v705 = vpack.c.b16 %v655, %v655
    %v706 = vpack.c.b16 %v656, %v656
    %v707 = vpack.c.b16 %v657, %v657
    %v708 = vpack.c.b16 %v658, %v658
    %v709 = vpack.c.b16 %v659, %v659
    %v710 = vpack.c.b16 %v660, %v660
    %v711 = vpack.c.b16 %v661, %v661
    %v712 = vpack.c.b16 %v662, %v662
    %v713 = vpack.c.b16 %v663, %v663
    %v714 = vpack.c.b16 %v664, %v664
    %v715 = vpack.c.b16 %v665, %v665
    %v716 = vpack.c.b16 %v666, %v666
    %v717 = vpack.c.b16 %v667, %v667
    %v718 = vpack.c.b16 %v668, %v668
    %v719 = vpack.c.b16 %v669, %v669
    %v720 = vpack.c.b16 %v670, %v670
    %v721 = vpack.c.b16 %v671, %v671
    %v722 = vpack.c.b16 %v672, %v672
    %v723 = vpack.c.b16 %v673, %v673
    %v724 = vpack.c.b16 %v674, %v674
    %v725 = vpack.c.b16 %v675, %v675
    %v726 = vpack.c.b16 %v676, %v676
    %v727 = vpack.c.b16 %v677, %v677
    %v728 = vpack.c.b16 %v678, %v678
    %v729 = vpack.c.b16 %v679, %v679
    %v730 = vpack.c.b16 %v680, %v680
    %v731 = vpack.c.b16 %v681, %v681
    %v732 = vpack.c.b16 %v682, %v682
    %v733 = vpack.c.b16 %v683, %v683
    %v734 = vpack.c.b16 %v684, %v684
    %v735 = vpack.c.b16 %v685, %v685
    %v736 = vpack.c.b16 %v686, %v686
    %v737 = vpack.c.b16 %v687, %v687
    %v738 = vpack.c.b16 %v688, %v688
    %v739 = vpack.c.b16 %v689, %v689
    %v740 = vpack.c.b16 %v690, %v690
    %v741 = vpack.c.b16 %v691, %v691
    %v742 = vpack.c.b16 %v692, %v692
    %v743 = vpack.c.b16 %v693, %v693
    %v744 = vpack.c.b16 %v694, %v694
    %v745 = vpack.c.b16 %v695, %v695
    %v746 = vpack.c.b16 %v696, %v696
    %v747 = vpack.c.b16 %v697, %v697
    %798 = vst [vmem:[#allocation7] sm:$0xf] %v698
    %799 = vst [vmem:[#allocation7 + $0x4] sm:$0xf] %v699
    %800 = vst [vmem:[#allocation7 + $0x8] sm:$0xf] %v700
    %801 = vst [vmem:[#allocation7 + $0xc] sm:$0xf] %v701
    %802 = vst [vmem:[#allocation7 + $0x10] sm:$0xf] %v702
    %803 = vst [vmem:[#allocation7 + $0x14] sm:$0xf] %v703
    %804 = vst [vmem:[#allocation7 + $0x18] sm:$0xf] %v704
    %805 = vst [vmem:[#allocation7 + $0x1c] sm:$0xf] %v705
    %806 = vst [vmem:[#allocation7 + $0x20] sm:$0xf] %v706
    %807 = vst [vmem:[#allocation7 + $0x24] sm:$0xf] %v707
    %808 = vst [vmem:[#allocation7 + $0x28] sm:$0xf] %v708
    %809 = vst [vmem:[#allocation7 + $0x2c] sm:$0xf] %v709
    %810 = vst [vmem:[#allocation7 + $0x30] sm:$0xf] %v710
    %811 = vst [vmem:[#allocation7 + $0x34] sm:$0xf] %v711
    %812 = vst [vmem:[#allocation7 + $0x38] sm:$0xf] %v712
    %813 = vst [vmem:[#allocation7 + $0x3c] sm:$0xf] %v713
    %814 = vst [vmem:[#allocation7 + $0x40] sm:$0xf] %v714
    %815 = vst [vmem:[#allocation7 + $0x44] sm:$0xf] %v715
    %816 = vst [vmem:[#allocation7 + $0x48] sm:$0xf] %v716
    %817 = vst [vmem:[#allocation7 + $0x4c] sm:$0xf] %v717
    %818 = vst [vmem:[#allocation7 + $0x50] sm:$0xf] %v718
    %819 = vst [vmem:[#allocation7 + $0x54] sm:$0xf] %v719
    %820 = vst [vmem:[#allocation7 + $0x58] sm:$0xf] %v720
    %821 = vst [vmem:[#allocation7 + $0x5c] sm:$0xf] %v721
    %822 = vst [vmem:[#allocation7 + $0x60] sm:$0xf] %v722
    %823 = vst [vmem:[#allocation7 + $0x64] sm:$0xf] %v723
    %824 = vst [vmem:[#allocation7 + $0x68] sm:$0xf] %v724
    %825 = vst [vmem:[#allocation7 + $0x6c] sm:$0xf] %v725
    %826 = vst [vmem:[#allocation7 + $0x70] sm:$0xf] %v726
    %827 = vst [vmem:[#allocation7 + $0x74] sm:$0xf] %v727
    %828 = vst [vmem:[#allocation7 + $0x78] sm:$0xf] %v728
    %829 = vst [vmem:[#allocation7 + $0x7c] sm:$0xf] %v729
    %830 = vst [vmem:[#allocation7 + $0x80] sm:$0xf] %v730
    %831 = vst [vmem:[#allocation7 + $0x84] sm:$0xf] %v731
    %832 = vst [vmem:[#allocation7 + $0x88] sm:$0xf] %v732
    %833 = vst [vmem:[#allocation7 + $0x8c] sm:$0xf] %v733
    %834 = vst [vmem:[#allocation7 + $0x90] sm:$0xf] %v734
    %835 = vst [vmem:[#allocation7 + $0x94] sm:$0xf] %v735
    %836 = vst [vmem:[#allocation7 + $0x98] sm:$0xf] %v736
    %837 = vst [vmem:[#allocation7 + $0x9c] sm:$0xf] %v737
    %838 = vst [vmem:[#allocation7 + $0xa0] sm:$0xf] %v738
    %839 = vst [vmem:[#allocation7 + $0xa4] sm:$0xf] %v739
    %840 = vst [vmem:[#allocation7 + $0xa8] sm:$0xf] %v740
    %841 = vst [vmem:[#allocation7 + $0xac] sm:$0xf] %v741
    %842 = vst [vmem:[#allocation7 + $0xb0] sm:$0xf] %v742
    %843 = vst [vmem:[#allocation7 + $0xb4] sm:$0xf] %v743
    %844 = vst [vmem:[#allocation7 + $0xb8] sm:$0xf] %v744
    %845 = vst [vmem:[#allocation7 + $0xbc] sm:$0xf] %v745
    %846 = vst [vmem:[#allocation7 + $0xc0] sm:$0xf] %v746
    %847 = vst [vmem:[#allocation7 + $0xc4] sm:$0xf] %v747
    // Predicated region
    $region22: #{tpu_custom_call.1} parent=1 // pred_check
      _
    $region23: #{tpu_custom_call.1} parent=1 // pred_check_branch
      %849 = sbr.rel (0) target = $region25
    $region24: #{tpu_custom_call.1} parent=1 // pred_region
      %s851 = ssub.s32 3200, 3200
      %852 = vsyncadd [#allocation4], %s851
      %s853 = sshll.u32 [#allocation7], 4
      %s854 = int_to_ptr.vmem [resolvable:$true] %s853
      %859 = dma.vmem_to_hbm [thread:$0]  %s854, 3200, %s3, [#allocation4], 64, 64, 4
    $region25: #{tpu_custom_call.1} parent=1 // pred_fallthru
      _
    // Predicated region
    $region26: #{tpu_custom_call.1} parent=1 // pred_check
      _
    $region27: #{tpu_custom_call.1} parent=1 // pred_check_branch
      %861 = sbr.rel (0) target = $region29
    $region28: #{tpu_custom_call.1} parent=1 // pred_region
      %862 = dma.done [#allocation4], 3200
    $region29: #{tpu_custom_call.1} parent=1 // pred_fallthru
      _
    %863 = vsyncpa [#allocation3], 1
    %864 = vsyncpa [#allocation6], 1
    %865 = vsyncpa [#allocation4], 1

</llo_original>
